<compile_context>
chip_gen: v7x
topology: tpu7x:2x2x1
jax: 0.10.0
libtpu: 0.0.40
codegen_flags: <defaults>
</compile_context>

<pallas_src>
import functools

import jax
import jax.numpy as jnp
from jax.experimental import pallas as pl
from jax.experimental.pallas import tpu as pltpu

_LANE = 128
_SUBLANE = 8


def _round_up(v, m):
    return (v + m - 1) // m * m


def _tpu_vmem_bytes():
    """Per-TensorCore physical VMEM (v5e/v6e: 128 MiB, v7x: 64 MiB)."""
    try:
        info = pltpu.get_tpu_info()
        for name in ("vmem_capacity_bytes", "vmem_bytes", "vmem_size_bytes"):
            v = getattr(info, name, None)
            if v:
                return int(v)
    except Exception:
        pass
    return 64 * 1024 * 1024  # conservative default (v7x)


def _num_tensorcores_per_chip():
    """Megacore detection: v4 / v5p / v7x expose 2 TensorCores per device."""
    try:
        kind = jax.devices()[0].device_kind.lower()
    except Exception:
        return 1
    for tag in ("v7", "v5p", "v4"):
        if tag in kind:
            return 2
    return 1


def _pick_row_tile(m, h_in, widest_dim, n_cores, vmem_cap, x_itemsize):
    """Row tile: big enough to amortize per-step overhead / reach the HBM
    roofline, small enough for VMEM, split across cores only on megacore."""
    m8 = _round_up(max(m, 1), _SUBLANE)
    # Generation-aware hard cap (v7x has only 64 MiB VMEM per TensorCore).
    tm_cap = 1024 if vmem_cap <= 64 * 1024 * 1024 else 2048
    # Keep the x row tile around 2-4 MiB and the widest live f32 activation
    # slab under ~8 MiB.
    bw_rows = max(256, (4 << 20) // max(1, h_in * x_itemsize))
    act_rows = max(128, (8 << 20) // max(1, widest_dim * 4))
    tm = min(tm_cap, bw_rows, act_rows, m8)
    # Dual-TensorCore chips only: target >= 2 grid steps per core so each
    # core's pipeline has something to prefetch against. Single-TC chips
    # (v5e/v6e) keep the biggest tile (no pointless split).
    if n_cores > 1:
        min_steps = 2 * n_cores
        if m8 >= _SUBLANE * min_steps:
            tm = min(tm, _round_up(pl.cdiv(m8, min_steps), _SUBLANE))
    tm = max(_SUBLANE, tm - tm % _SUBLANE)
    return tm


def _fused_mlp_kernel(x_ref, *refs, n_layers, compute_dtype):
    """refs = (w_0, b_0, w_1, b_1, ..., w_{L-1}, b_{L-1}, o_ref).

    x_ref: (tm, H_in) compute_dtype (bf16) row tile.
    w_l:   (K_pad, N_pad) compute_dtype, VMEM-resident across the grid.
    b_l:   (1, N_pad) f32.
    o_ref: (tm, H_out_pad) f32 (lane-dense padded output slab).
    """
    o_ref = refs[-1]
    h = x_ref[...]                                    # bf16
    for l in range(n_layers):
        w_ref = refs[2 * l]
        b_ref = refs[2 * l + 1]
        # MXU matmul: bf16 inputs, f32 accumulation.
        y = jnp.dot(h, w_ref[...], preferred_element_type=jnp.float32)
        # Bias + ReLU epilogue in f32 (safe on v5e's f32-only VPU).
        y = jnp.maximum(y + b_ref[...], 0.0)
        # Carry activations in bf16 between layers (halves vreg/VMEM pressure
        # and matches the cast the next matmul would do anyway); final layer
        # output stays f32 for the store.
        h = y.astype(compute_dtype) if l + 1 < n_layers else y
    o_ref[...] = h.astype(o_ref.dtype)


def init_mlp_params(key, layers, init_method="norm"):
    """Deterministic parameter init matching MLPLayers.init_weights.

    Weights stored pre-transposed as (in_size, out_size) so the kernel computes
    x @ W + b directly on the MXU.
    """
    params = []
    for (in_size, out_size) in zip(layers[:-1], layers[1:]):
        key, wk = jax.random.split(key)
        if init_method == "norm":
            w = 0.01 * jax.random.normal(wk, (in_size, out_size), jnp.float32)
        else:
            bound = 1.0 / jnp.sqrt(in_size)
            w = jax.random.uniform(
                wk, (in_size, out_size), jnp.float32, -bound, bound)
        b = jnp.zeros((out_size,), jnp.float32)      # bias.data.fill_(0.0)
        params.append((w, b))
    return params


def mlp_layers_forward(x, params, *, dropout=0.0, compute_dtype=jnp.bfloat16):
    """Forward pass of MLPLayers (inference).  x: (N, *, H_in) float32."""
    # Dropout with p=0.0 (module default) / eval mode is the identity.
    # TODO(synk): training-mode stochastic dropout masking not implemented.
    del dropout

    orig_shape = x.shape
    h_in = orig_shape[-1]
    out_dtype = x.dtype
    # bf16 x halves the dominant per-grid-step DMA stream (it is downcast
    # before the first matmul anyway, so numerics are unchanged).
    x2d = x.reshape(-1, h_in).astype(compute_dtype)
    m = x2d.shape[0]

    n_layers = len(params)
    h_out = params[-1][0].shape[1]

    # Lane-dense layer widths: pad every layer's output dim to a multiple of
    # 128 with zeros. Zero weight columns/rows and zero bias contribute
    # nothing through matmul + ReLU, so results are unchanged; stores become
    # unmasked and MXU tiles fill better.
    dims = [h_in] + [w.shape[1] for (w, _) in params]
    padded = [h_in] + [_round_up(d, _LANE) for d in dims[1:]]
    h_out_pad = padded[-1]

    ws, bs = [], []
    for l, (w, b) in enumerate(params):
        k_pad, n_pad = padded[l], padded[l + 1]
        wp = jnp.zeros((k_pad, n_pad), compute_dtype)
        wp = wp.at[: w.shape[0], : w.shape[1]].set(w.astype(compute_dtype))
        bp = jnp.zeros((1, n_pad), jnp.float32)
        bp = bp.at[0, : b.shape[0]].set(b.astype(jnp.float32))
        ws.append(wp)
        bs.append(bp)

    # ---------------- VMEM budgeting (generation aware) ----------------
    vmem_cap = _tpu_vmem_bytes()            # 128 MiB (v5e/v6e) / 64 MiB (v7x)
    n_cores = _num_tensorcores_per_chip()
    w_bytes = sum(a.size * a.dtype.itemsize for a in ws + bs)
    if w_bytes > int(0.45 * vmem_cap):
        # TODO(synk): K/N-tiled pltpu.emit_pipeline fallback for weight sets
        # too large to keep VMEM-resident.
        raise NotImplementedError(
            "weights too large for the fused VMEM-resident MLP kernel")

    x_itemsize = jnp.dtype(compute_dtype).itemsize
    out_itemsize = jnp.dtype(out_dtype).itemsize
    tm = _pick_row_tile(m, h_in, max(padded), n_cores, vmem_cap, x_itemsize)
    grid = (pl.cdiv(m, tm),)   # Pallas masks the partial last block.

    # Footprint: weights x2 (covers the double-buffered fallback path) plus
    # double-buffered x / out tiles plus live-activation headroom.
    need = (2 * w_bytes
            + 2 * tm * h_in * x_itemsize
            + 2 * tm * h_out_pad * out_itemsize
            + 2 * tm * max(padded) * 4)
    vmem_limit = int(min(0.85 * vmem_cap, max(32 << 20, need + (8 << 20))))

    flat_inputs = [x2d]
    for w, b in zip(ws, bs):
        flat_inputs.append(w)
        flat_inputs.append(b)

    # Advisory cost hint for XLA's scheduler.
    flops = 2 * m * sum(w.shape[0] * w.shape[1] for w in ws)
    bytes_accessed = (x2d.size * x_itemsize + w_bytes
                      + m * h_out_pad * out_itemsize)
    cost = pl.CostEstimate(flops=flops, transcendentals=0,
                           bytes_accessed=bytes_accessed)

    kernel = functools.partial(_fused_mlp_kernel, n_layers=n_layers,
                               compute_dtype=compute_dtype)

    def _run(single_buffer_weights):
        resident = ({"pipeline_mode": pl.Buffered(1)}
                    if single_buffer_weights else {})
        in_specs = [pl.BlockSpec((tm, h_in), lambda i: (i, 0))]
        for w, b in zip(ws, bs):
            k_pad, n_pad = w.shape
            # Constant block index across the M grid -> weight/bias stay
            # resident in VMEM; Buffered(1) single-buffers them so they cost
            # their bytes only once.
            in_specs.append(
                pl.BlockSpec((k_pad, n_pad), lambda i: (0, 0), **resident))
            in_specs.append(
                pl.BlockSpec((1, n_pad), lambda i: (0, 0), **resident))
        return pl.pallas_call(
            kernel,
            out_shape=jax.ShapeDtypeStruct((m, h_out_pad), out_dtype),
            grid_spec=pltpu.PrefetchScalarGridSpec(
                num_scalar_prefetch=0,
                grid=grid,
                in_specs=in_specs,
                # Lane-dense (multiple-of-128) output slab -> unmasked stores.
                out_specs=pl.BlockSpec((tm, h_out_pad), lambda i: (i, 0)),
            ),
            compiler_params=pltpu.CompilerParams(
                dimension_semantics=("parallel",),
                vmem_limit_bytes=vmem_limit,
            ),
            cost_estimate=cost,
        )(*flat_inputs)

    try:
        out2d = _run(True)
    except Exception:
        # TODO(synk): drop this fallback once pl.Buffered(1) single-buffering
        # of resident blocks is guaranteed on the installed jax version.
        out2d = _run(False)

    if h_out_pad != h_out:
        out2d = out2d[:, :h_out]
    return out2d.reshape(orig_shape[:-1] + (h_out,))


if __name__ == "__main__":
    layers = [64, 32, 16]
    batch = 128

    key = jax.random.PRNGKey(0)
    key, xk = jax.random.split(key)
    x = jax.random.normal(xk, (batch, layers[0]), jnp.float32)

    params = init_mlp_params(key, layers, init_method="norm")

    out = mlp_layers_forward(x, params)
    out = jax.block_until_ready(out)
    assert out.shape == (batch, layers[-1]), out.shape

    # Reference 1: same bf16-matmul / f32-accumulate recipe (near-exact match).
    ref_bf16 = x
    for (w, b) in params:
        ref_bf16 = jnp.dot(ref_bf16.astype(jnp.bfloat16), w.astype(jnp.bfloat16),
                           preferred_element_type=jnp.float32) + b
        ref_bf16 = jnp.maximum(ref_bf16, 0.0)
    err1 = float(jnp.max(jnp.abs(out - ref_bf16)))
    assert jnp.allclose(out, ref_bf16, atol=1e-4, rtol=1e-3), err1

    # Reference 2: full-f32 MLPLayers forward (looser tolerance documents the
    # bf16-compute drift versus the original f32 PyTorch module).
    ref_f32 = x
    for (w, b) in params:
        ref_f32 = jnp.maximum(jnp.dot(ref_f32, w) + b, 0.0)
    err2 = float(jnp.max(jnp.abs(out - ref_f32)))
    assert jnp.allclose(out, ref_f32, atol=5e-2, rtol=5e-2), err2

    print("KERNEL_OK")
</pallas_src>

<mosaic_0001>
module attributes {stable_mosaic.version = 11 : i64} {
  func.func @_fused_mlp_kernel(%arg0: i32, %arg1: memref<128x64xbf16, #tpu.memory_space<vmem>>, %arg2: memref<64x128xbf16, #tpu.memory_space<vmem>>, %arg3: memref<1x128xf32, #tpu.memory_space<vmem>>, %arg4: memref<128x128xbf16, #tpu.memory_space<vmem>>, %arg5: memref<1x128xf32, #tpu.memory_space<vmem>>, %arg6: memref<128x128xf32, #tpu.memory_space<vmem>>) attributes {dimension_semantics = [#tpu.dimension_semantics<parallel>], iteration_bounds = array<i64: 1>, scalar_prefetch = 0 : i64, scratch_operands = 0 : i64, tpu.core_type = #tpu.core_type<tc>, window_params = [{transform_indices = @transform_0, window_bounds = array<i64: 128, 64>}, {pipeline_mode = #tpu.pipeline_mode<synchronous>, transform_indices = @transform_1, window_bounds = array<i64: 64, 128>}, {pipeline_mode = #tpu.pipeline_mode<synchronous>, transform_indices = @transform_2, window_bounds = array<i64: 1, 128>}, {pipeline_mode = #tpu.pipeline_mode<synchronous>, transform_indices = @transform_3, window_bounds = array<i64: 128, 128>}, {pipeline_mode = #tpu.pipeline_mode<synchronous>, transform_indices = @transform_4, window_bounds = array<i64: 1, 128>}, {transform_indices = @transform_5, window_bounds = array<i64: 128, 128>}]} {
    %c0 = arith.constant 0 : index
    %c0_0 = arith.constant 0 : index
    %0 = vector.load %arg1[%c0, %c0_0] : memref<128x64xbf16, #tpu.memory_space<vmem>>, vector<128x64xbf16>
    %c0_1 = arith.constant 0 : index
    %c0_2 = arith.constant 0 : index
    %1 = vector.load %arg2[%c0_1, %c0_2] : memref<64x128xbf16, #tpu.memory_space<vmem>>, vector<64x128xbf16>
    %cst = arith.constant dense<0.000000e+00> : vector<128x128xf32>
    %2 = tpu.matmul %0, %1, %cst {dimension_numbers = #tpu.dot_dimension_numbers<[1], [0], [0], [1], [0, 0, 1, 1], [], []>} : vector<128x64xbf16>, vector<64x128xbf16>, vector<128x128xf32> -> vector<128x128xf32>
    %c0_3 = arith.constant 0 : index
    %c0_4 = arith.constant 0 : index
    %3 = vector.load %arg3[%c0_3, %c0_4] : memref<1x128xf32, #tpu.memory_space<vmem>>, vector<1x128xf32>
    %4 = vector.broadcast %3 : vector<1x128xf32> to vector<128x128xf32>
    %5 = arith.addf %2, %4 : vector<128x128xf32>
    %cst_5 = arith.constant 0.000000e+00 : f32
    %6 = vector.broadcast %cst_5 : f32 to vector<128x128xf32>
    %7 = arith.maximumf %5, %6 : vector<128x128xf32>
    %8 = arith.truncf %7 : vector<128x128xf32> to vector<128x128xbf16>
    %c0_6 = arith.constant 0 : index
    %c0_7 = arith.constant 0 : index
    %9 = vector.load %arg4[%c0_6, %c0_7] : memref<128x128xbf16, #tpu.memory_space<vmem>>, vector<128x128xbf16>
    %cst_8 = arith.constant dense<0.000000e+00> : vector<128x128xf32>
    %10 = tpu.matmul %8, %9, %cst_8 {dimension_numbers = #tpu.dot_dimension_numbers<[1], [0], [0], [1], [0, 0, 1, 1], [], []>} : vector<128x128xbf16>, vector<128x128xbf16>, vector<128x128xf32> -> vector<128x128xf32>
    %c0_9 = arith.constant 0 : index
    %c0_10 = arith.constant 0 : index
    %11 = vector.load %arg5[%c0_9, %c0_10] : memref<1x128xf32, #tpu.memory_space<vmem>>, vector<1x128xf32>
    %12 = vector.broadcast %11 : vector<1x128xf32> to vector<128x128xf32>
    %13 = arith.addf %10, %12 : vector<128x128xf32>
    %cst_11 = arith.constant 0.000000e+00 : f32
    %14 = vector.broadcast %cst_11 : f32 to vector<128x128xf32>
    %15 = arith.maximumf %13, %14 : vector<128x128xf32>
    %c0_12 = arith.constant 0 : index
    %c0_13 = arith.constant 0 : index
    %16 = vector.load %arg6[%c0_12, %c0_13] : memref<128x128xf32, #tpu.memory_space<vmem>>, vector<128x128xf32>
    tpu.vector_store %arg6[%c0_12, %c0_13], %15 {strides = array<i32>} : memref<128x128xf32, #tpu.memory_space<vmem>>, vector<128x128xf32>,
    return
  }
  func.func @transform_0(%arg0: i32) -> (i32, i32) {
    %c0_i32 = arith.constant 0 : i32
    %c0_i32_0 = arith.constant 0 : i32
    return %arg0, %c0_i32 : i32, i32
  }
  func.func @transform_1(%arg0: i32) -> (i32, i32) {
    %c0_i32 = arith.constant 0 : i32
    %c0_i32_0 = arith.constant 0 : i32
    %c0_i32_1 = arith.constant 0 : i32
    return %c0_i32, %c0_i32_0 : i32, i32
  }
  func.func @transform_2(%arg0: i32) -> (i32, i32) {
    %c0_i32 = arith.constant 0 : i32
    %c0_i32_0 = arith.constant 0 : i32
    %c0_i32_1 = arith.constant 0 : i32
    return %c0_i32, %c0_i32_0 : i32, i32
  }
  func.func @transform_3(%arg0: i32) -> (i32, i32) {
    %c0_i32 = arith.constant 0 : i32
    %c0_i32_0 = arith.constant 0 : i32
    %c0_i32_1 = arith.constant 0 : i32
    return %c0_i32, %c0_i32_0 : i32, i32
  }
  func.func @transform_4(%arg0: i32) -> (i32, i32) {
    %c0_i32 = arith.constant 0 : i32
    %c0_i32_0 = arith.constant 0 : i32
    %c0_i32_1 = arith.constant 0 : i32
    return %c0_i32, %c0_i32_0 : i32, i32
  }
  func.func @transform_5(%arg0: i32) -> (i32, i32) {
    %c0_i32 = arith.constant 0 : i32
    %c0_i32_0 = arith.constant 0 : i32
    return %arg0, %c0_i32 : i32, i32
  }
}

module attributes {stable_mosaic.version = 11 : i64} {
  func.func @_fused_mlp_kernel(%arg0: i32, %arg1: memref<128x64xbf16, #tpu.memory_space<vmem>>, %arg2: memref<64x128xbf16, #tpu.memory_space<vmem>>, %arg3: memref<1x128xf32, #tpu.memory_space<vmem>>, %arg4: memref<128x128xbf16, #tpu.memory_space<vmem>>, %arg5: memref<1x128xf32, #tpu.memory_space<vmem>>, %arg6: memref<128x128xf32, #tpu.memory_space<vmem>>) attributes {dimension_semantics = [#tpu.dimension_semantics<parallel>], iteration_bounds = array<i64: 1>, scalar_prefetch = 0 : i64, scratch_operands = 0 : i64, tpu.core_type = #tpu.core_type<tc>, window_params = [{transform_indices = @transform_0, window_bounds = array<i64: 128, 64>}, {pipeline_mode = #tpu.pipeline_mode<synchronous>, transform_indices = @transform_1, window_bounds = array<i64: 64, 128>}, {pipeline_mode = #tpu.pipeline_mode<synchronous>, transform_indices = @transform_2, window_bounds = array<i64: 1, 128>}, {pipeline_mode = #tpu.pipeline_mode<synchronous>, transform_indices = @transform_3, window_bounds = array<i64: 128, 128>}, {pipeline_mode = #tpu.pipeline_mode<synchronous>, transform_indices = @transform_4, window_bounds = array<i64: 1, 128>}, {transform_indices = @transform_5, window_bounds = array<i64: 128, 128>}]} {
    %c0 = arith.constant 0 : index
    %c0_0 = arith.constant 0 : index
    %0 = vector.load %arg1[%c0, %c0_0] : memref<128x64xbf16, #tpu.memory_space<vmem>>, vector<128x64xbf16>
    %c0_1 = arith.constant 0 : index
    %c0_2 = arith.constant 0 : index
    %1 = vector.load %arg2[%c0_1, %c0_2] : memref<64x128xbf16, #tpu.memory_space<vmem>>, vector<64x128xbf16>
    %cst = arith.constant dense<0.000000e+00> : vector<128x128xf32>
    %2 = tpu.matmul %0, %1, %cst {dimension_numbers = #tpu.dot_dimension_numbers<[1], [0], [0], [1], [0, 0, 1, 1], [], []>} : vector<128x64xbf16>, vector<64x128xbf16>, vector<128x128xf32> -> vector<128x128xf32>
    %c0_3 = arith.constant 0 : index
    %c0_4 = arith.constant 0 : index
    %3 = vector.load %arg3[%c0_3, %c0_4] : memref<1x128xf32, #tpu.memory_space<vmem>>, vector<1x128xf32>
    %4 = vector.broadcast %3 : vector<1x128xf32> to vector<128x128xf32>
    %5 = arith.addf %2, %4 : vector<128x128xf32>
    %cst_5 = arith.constant 0.000000e+00 : f32
    %6 = vector.broadcast %cst_5 : f32 to vector<128x128xf32>
    %7 = arith.maximumf %5, %6 : vector<128x128xf32>
    %8 = arith.truncf %7 : vector<128x128xf32> to vector<128x128xbf16>
    %c0_6 = arith.constant 0 : index
    %c0_7 = arith.constant 0 : index
    %9 = vector.load %arg4[%c0_6, %c0_7] : memref<128x128xbf16, #tpu.memory_space<vmem>>, vector<128x128xbf16>
    %cst_8 = arith.constant dense<0.000000e+00> : vector<128x128xf32>
    %10 = tpu.matmul %8, %9, %cst_8 {dimension_numbers = #tpu.dot_dimension_numbers<[1], [0], [0], [1], [0, 0, 1, 1], [], []>} : vector<128x128xbf16>, vector<128x128xbf16>, vector<128x128xf32> -> vector<128x128xf32>
    %c0_9 = arith.constant 0 : index
    %c0_10 = arith.constant 0 : index
    %11 = vector.load %arg5[%c0_9, %c0_10] : memref<1x128xf32, #tpu.memory_space<vmem>>, vector<1x128xf32>
    %12 = vector.broadcast %11 : vector<1x128xf32> to vector<128x128xf32>
    %13 = arith.addf %10, %12 : vector<128x128xf32>
    %cst_11 = arith.constant 0.000000e+00 : f32
    %14 = vector.broadcast %cst_11 : f32 to vector<128x128xf32>
    %15 = arith.maximumf %13, %14 : vector<128x128xf32>
    %c0_12 = arith.constant 0 : index
    %c0_13 = arith.constant 0 : index
    %16 = vector.load %arg6[%c0_12, %c0_13] : memref<128x128xf32, #tpu.memory_space<vmem>>, vector<128x128xf32>
    tpu.vector_store %arg6[%c0_12, %c0_13], %15 {strides = array<i32>} : memref<128x128xf32, #tpu.memory_space<vmem>>, vector<128x128xf32>,
    return
  }
  func.func @transform_0(%arg0: i32) -> (i32, i32) {
    %c0_i32 = arith.constant 0 : i32
    %c0_i32_0 = arith.constant 0 : i32
    return %arg0, %c0_i32 : i32, i32
  }
  func.func @transform_1(%arg0: i32) -> (i32, i32) {
    %c0_i32 = arith.constant 0 : i32
    %c0_i32_0 = arith.constant 0 : i32
    %c0_i32_1 = arith.constant 0 : i32
    return %c0_i32, %c0_i32_0 : i32, i32
  }
  func.func @transform_2(%arg0: i32) -> (i32, i32) {
    %c0_i32 = arith.constant 0 : i32
    %c0_i32_0 = arith.constant 0 : i32
    %c0_i32_1 = arith.constant 0 : i32
    return %c0_i32, %c0_i32_0 : i32, i32
  }
  func.func @transform_3(%arg0: i32) -> (i32, i32) {
    %c0_i32 = arith.constant 0 : i32
    %c0_i32_0 = arith.constant 0 : i32
    %c0_i32_1 = arith.constant 0 : i32
    return %c0_i32, %c0_i32_0 : i32, i32
  }
  func.func @transform_4(%arg0: i32) -> (i32, i32) {
    %c0_i32 = arith.constant 0 : i32
    %c0_i32_0 = arith.constant 0 : i32
    %c0_i32_1 = arith.constant 0 : i32
    return %c0_i32, %c0_i32_0 : i32, i32
  }
  func.func @transform_5(%arg0: i32) -> (i32, i32) {
    %c0_i32 = arith.constant 0 : i32
    %c0_i32_0 = arith.constant 0 : i32
    return %arg0, %c0_i32 : i32, i32
  }
}

</mosaic_0001>

<llo_original>
// kernel: tpu_custom_call.1
$region0: #{tpu_custom_call.1}
  #allocation0 [shape = 'u32[]', space=smem, size = 0x4, offset = 0x4, fixed_abs, tag = 'smem constant byte address 0x4 - core index']
  #allocation1 [shape = 'u32[144,128]{1,0:T(1,128)}', space=vmem, size = 0x12000, scoped, tag = 'internal scratch']
  %s0 = inlined_call_operand.vmem [shape: bf16[128,64], index: 0, kind: input, shape index: {}]
  %s1 = inlined_call_operand.vmem [shape: bf16[64,128], index: 1, kind: input, shape index: {}]
  %s2 = inlined_call_operand.vmem [shape: f32[1,128], index: 2, kind: input, shape index: {}]
  %s3 = inlined_call_operand.vmem [shape: bf16[128,128], index: 3, kind: input, shape index: {}]
  %s4 = inlined_call_operand.vmem [shape: f32[1,128], index: 4, kind: input, shape index: {}]
  %s5 = inlined_call_operand.hbm [shape: f32[128,128], index: 5, kind: output, shape index: {}]
  %s6 = sld [smem:[#allocation0]]
  $region30: #{tpu_custom_call.1} parent=0
    _
  %s8 = ssub.s32 1, %s6
  %s9 = scalar_select 0, %s8, %s6
  $region1: #{tpu_custom_call.1} parent=0
    #allocation2 [shape = 'u8[65536]{0}', space=vmem, size = 0x10000, scoped, tag = 'output window, operand 0, single buffered']
    #allocation3 [shape = 's32[1]{0}', space=sflag, size = 0x4, scoped, tag = 'scoped memory for tpu_custom_call.1']
    %10 = vsyncpa [#allocation3], 0
    // Predicated region
    $region2: #{tpu_custom_call.1} parent=1 // pred_check
      _
    $region3: #{tpu_custom_call.1} parent=1 // pred_check_branch
      %12 = sbr.rel (0) target = $region5
    $region4: #{tpu_custom_call.1} parent=1 // pred_region
      _
    $region5: #{tpu_custom_call.1} parent=1 // pred_fallthru
      _
    // Predicated region
    $region6: #{tpu_custom_call.1} parent=1 // pred_check
      _
    $region7: #{tpu_custom_call.1} parent=1 // pred_check_branch
      %14 = sbr.rel (0) target = $region9
    $region8: #{tpu_custom_call.1} parent=1 // pred_region
      _
    $region9: #{tpu_custom_call.1} parent=1 // pred_fallthru
      _
    // Predicated region
    $region10: #{tpu_custom_call.1} parent=1 // pred_check
      _
    $region11: #{tpu_custom_call.1} parent=1 // pred_check_branch
      %16 = sbr.rel (0) target = $region13
    $region12: #{tpu_custom_call.1} parent=1 // pred_region
      _
    $region13: #{tpu_custom_call.1} parent=1 // pred_fallthru
      _
    // Predicated region
    $region14: #{tpu_custom_call.1} parent=1 // pred_check
      _
    $region15: #{tpu_custom_call.1} parent=1 // pred_check_branch
      %18 = sbr.rel (0) target = $region17
    $region16: #{tpu_custom_call.1} parent=1 // pred_region
      _
    $region17: #{tpu_custom_call.1} parent=1 // pred_fallthru
      _
    // Predicated region
    $region18: #{tpu_custom_call.1} parent=1 // pred_check
      _
    $region19: #{tpu_custom_call.1} parent=1 // pred_check_branch
      %20 = sbr.rel (0) target = $region21
    $region20: #{tpu_custom_call.1} parent=1 // pred_region
      _
    $region21: #{tpu_custom_call.1} parent=1 // pred_fallthru
      _
    %v22 = vld [vmem:[%s0] sm:$0xf]
    %v23 = vld [vmem:[%s0 + $0x4] sm:$0xf]
    %v24 = vld [vmem:[%s0 + $0x8] sm:$0xf]
    %v25 = vld [vmem:[%s0 + $0xc] sm:$0xf]
    %v26 = vld [vmem:[%s0 + $0x10] sm:$0xf]
    %v27 = vld [vmem:[%s0 + $0x14] sm:$0xf]
    %v28 = vld [vmem:[%s0 + $0x18] sm:$0xf]
    %v29 = vld [vmem:[%s0 + $0x1c] sm:$0xf]
    %v30 = vld [vmem:[%s0 + $0x20] sm:$0xf]
    %v31 = vld [vmem:[%s0 + $0x24] sm:$0xf]
    %v32 = vld [vmem:[%s0 + $0x28] sm:$0xf]
    %v33 = vld [vmem:[%s0 + $0x2c] sm:$0xf]
    %v34 = vld [vmem:[%s0 + $0x30] sm:$0xf]
    %v35 = vld [vmem:[%s0 + $0x34] sm:$0xf]
    %v36 = vld [vmem:[%s0 + $0x38] sm:$0xf]
    %v37 = vld [vmem:[%s0 + $0x3c] sm:$0xf]
    %v38 = vld [vmem:[%s1] sm:$0xf]
    %v39 = vld [vmem:[%s1 + $0x4] sm:$0xf]
    %v40 = vld [vmem:[%s1 + $0x8] sm:$0xf]
    %v41 = vld [vmem:[%s1 + $0xc] sm:$0xf]
    %v42 = vld [vmem:[%s1 + $0x10] sm:$0xf]
    %v43 = vld [vmem:[%s1 + $0x14] sm:$0xf]
    %v44 = vld [vmem:[%s1 + $0x18] sm:$0xf]
    %v45 = vld [vmem:[%s1 + $0x1c] sm:$0xf]
    %v46 = vld [vmem:[%s2] sm:$0x1]
    %v48 = vlaneseq
    %v49 = vshrl.u32 %v48, 7
    %v50 = vsub.s32 0, %v49
    %v51 = vrot.slane %v46, %v50
    %v69 = vunpack.c.l.b16 %v22
    %v70 = vunpack.c.l.b16 %v23
    %v71 = vunpack.c.l.b16 %v24
    %v72 = vunpack.c.l.b16 %v25
    %v73 = vunpack.c.l.b16 %v26
    %v74 = vunpack.c.l.b16 %v27
    %v75 = vunpack.c.l.b16 %v28
    %v76 = vunpack.c.l.b16 %v29
    %v77 = vunpack.c.l.b16 %v30
    %v78 = vunpack.c.l.b16 %v31
    %v79 = vunpack.c.l.b16 %v32
    %v80 = vunpack.c.l.b16 %v33
    %v81 = vunpack.c.l.b16 %v34
    %v82 = vunpack.c.l.b16 %v35
    %v83 = vunpack.c.l.b16 %v36
    %v84 = vunpack.c.l.b16 %v37
    %v85 = vpack.c.b16 %v70, %v69
    %v86 = vpack.c.b16 %v72, %v71
    %v87 = vpack.c.b16 %v74, %v73
    %v88 = vpack.c.b16 %v76, %v75
    %v89 = vpack.c.b16 %v78, %v77
    %v90 = vpack.c.b16 %v80, %v79
    %v91 = vpack.c.b16 %v82, %v81
    %v92 = vpack.c.b16 %v84, %v83
    %v101 = vunpack.c.l.b16 %v38
    %v102 = vunpack.c.l.b16 %v39
    %v103 = vunpack.c.l.b16 %v40
    %v104 = vunpack.c.l.b16 %v41
    %v105 = vunpack.c.l.b16 %v42
    %v106 = vunpack.c.l.b16 %v43
    %v107 = vunpack.c.l.b16 %v44
    %v108 = vunpack.c.l.b16 %v45
    %v109 = vpack.c.b16 %v102, %v101
    %v110 = vpack.c.b16 %v104, %v103
    %v111 = vpack.c.b16 %v106, %v105
    %v112 = vpack.c.b16 %v108, %v107
    %vm117 = vcmask 523264
    %v119 = vsel %vm117, %v85, 0
    %v122 = vsel %vm117, %v86, 0
    %v125 = vsel %vm117, %v87, 0
    %v128 = vsel %vm117, %v88, 0
    %v131 = vsel %vm117, %v89, 0
    %v134 = vsel %vm117, %v90, 0
    %v137 = vsel %vm117, %v91, 0
    %v140 = vsel %vm117, %v92, 0
    %142 = vmatprep.subr.bf16.mxu0 0
    %143 = vmatpush1.bf16.msra.mxu0 %v109
    %144 = vmatprep.subr.bf16.mxu0 0
    %145 = vmatpush1.bf16.msra.mxu0 %v110
    %146 = vmatprep.subr.bf16.mxu0 0
    %147 = vmatpush1.bf16.msra.mxu0 %v111
    %148 = vmatprep.subr.bf16.mxu0 0
    %149 = vmatpush1.bf16.msra.mxu0 %v112
    %150 = vmatprep.subr.bf16.mxu0 0
    %151 = vmatpush1.bf16.msra.mxu0 0
    %152 = vmatprep.subr.bf16.mxu0 0
    %153 = vmatpush1.bf16.msra.mxu0 0
    %154 = vmatprep.subr.bf16.mxu0 0
    %155 = vmatpush1.bf16.msra.mxu0 0
    %156 = vmatprep.subr.bf16.mxu0 0
    %157 = vmatpush1.bf16.msra.mxu0 0
    %158 = vmatprep.subr.bf16.mxu0 0
    %159 = vmatpush1.bf16.msra.mxu0 0
    %160 = vmatprep.subr.bf16.mxu0 0
    %161 = vmatpush1.bf16.msra.mxu0 0
    %162 = vmatprep.subr.bf16.mxu0 0
    %163 = vmatpush1.bf16.msra.mxu0 0
    %164 = vmatprep.subr.bf16.mxu0 0
    %165 = vmatpush1.bf16.msra.mxu0 0
    %166 = vmatprep.subr.bf16.mxu0 0
    %167 = vmatpush1.bf16.msra.mxu0 0
    %168 = vmatprep.subr.bf16.mxu0 0
    %169 = vmatpush1.bf16.msra.mxu0 0
    %170 = vmatprep.subr.bf16.mxu0 0
    %171 = vmatpush1.bf16.msra.mxu0 0
    %172 = vmatprep.subr.bf16.mxu0 0
    %173 = vmatpush1.bf16.msra.mxu0 0
    %174 = vmatprep.mubr.bf16.mxu0 0
    %175 = vmatmul.mubr.bf16.gmra.mrb[0].mxu0 %v119
    %v176 = vpop.f32.mrb[0].mxu0
    %v177 = vadd.f32 %v51, %v176
    %v178 = vpop.f32.mrb[0].mxu0
    %v179 = vpop.f32.mrb[0].mxu0
    %v180 = vadd.f32 %v51, %v179
    %v181 = vpop.f32.mrb[0].mxu0
    %182 = vmatprep.mubr.bf16.mxu0 0
    %183 = vmatmul.mubr.bf16.gmra.mrb[0].mxu0 %v122
    %v184 = vpop.f32.mrb[0].mxu0
    %v185 = vadd.f32 %v51, %v184
    %v186 = vpop.f32.mrb[0].mxu0
    %v187 = vpop.f32.mrb[0].mxu0
    %v188 = vadd.f32 %v51, %v187
    %v189 = vpop.f32.mrb[0].mxu0
    %190 = vmatprep.mubr.bf16.mxu0 0
    %191 = vmatmul.mubr.bf16.gmra.mrb[0].mxu0 %v125
    %v192 = vpop.f32.mrb[0].mxu0
    %v193 = vadd.f32 %v51, %v192
    %v194 = vpop.f32.mrb[0].mxu0
    %v195 = vpop.f32.mrb[0].mxu0
    %v196 = vadd.f32 %v51, %v195
    %v197 = vpop.f32.mrb[0].mxu0
    %198 = vmatprep.mubr.bf16.mxu0 0
    %199 = vmatmul.mubr.bf16.gmra.mrb[0].mxu0 %v128
    %v200 = vpop.f32.mrb[0].mxu0
    %v201 = vadd.f32 %v51, %v200
    %v202 = vpop.f32.mrb[0].mxu0
    %v203 = vpop.f32.mrb[0].mxu0
    %v204 = vadd.f32 %v51, %v203
    %v205 = vpop.f32.mrb[0].mxu0
    %206 = vmatprep.mubr.bf16.mxu0 0
    %207 = vmatmul.mubr.bf16.gmra.mrb[0].mxu0 %v131
    %v208 = vpop.f32.mrb[0].mxu0
    %v209 = vadd.f32 %v51, %v208
    %v210 = vpop.f32.mrb[0].mxu0
    %v211 = vpop.f32.mrb[0].mxu0
    %v212 = vadd.f32 %v51, %v211
    %v213 = vpop.f32.mrb[0].mxu0
    %214 = vmatprep.mubr.bf16.mxu0 0
    %215 = vmatmul.mubr.bf16.gmra.mrb[0].mxu0 %v134
    %v216 = vpop.f32.mrb[0].mxu0
    %v217 = vadd.f32 %v51, %v216
    %v218 = vpop.f32.mrb[0].mxu0
    %v219 = vpop.f32.mrb[0].mxu0
    %v220 = vadd.f32 %v51, %v219
    %v221 = vpop.f32.mrb[0].mxu0
    %222 = vmatprep.mubr.bf16.mxu0 0
    %223 = vmatmul.mubr.bf16.gmra.mrb[0].mxu0 %v137
    %v224 = vpop.f32.mrb[0].mxu0
    %v225 = vadd.f32 %v51, %v224
    %v226 = vpop.f32.mrb[0].mxu0
    %v227 = vpop.f32.mrb[0].mxu0
    %v228 = vadd.f32 %v51, %v227
    %v229 = vpop.f32.mrb[0].mxu0
    %230 = vmatprep.mubr.bf16.mxu0 0
    %231 = vmatmul.mubr.bf16.gmra.mrb[0].mxu0 %v140
    %v232 = vpop.f32.mrb[0].mxu0
    %v233 = vadd.f32 %v51, %v232
    %v234 = vpop.f32.mrb[0].mxu0
    %v235 = vpop.f32.mrb[0].mxu0
    %v236 = vadd.f32 %v51, %v235
    %v237 = vpop.f32.mrb[0].mxu0
    %238 = vdwg.mxu0
    %v239 = vmax.f32 %v177, 0.0
    %v240 = vmax.f32 %v180, 0.0
    %v241 = vmax.f32 %v185, 0.0
    %v242 = vmax.f32 %v188, 0.0
    %v243 = vmax.f32 %v193, 0.0
    %v244 = vmax.f32 %v196, 0.0
    %v245 = vmax.f32 %v201, 0.0
    %v246 = vmax.f32 %v204, 0.0
    %v247 = vmax.f32 %v209, 0.0
    %v248 = vmax.f32 %v212, 0.0
    %v249 = vmax.f32 %v217, 0.0
    %v250 = vmax.f32 %v220, 0.0
    %v251 = vmax.f32 %v225, 0.0
    %v252 = vmax.f32 %v228, 0.0
    %v253 = vmax.f32 %v233, 0.0
    %v254 = vmax.f32 %v236, 0.0
    %v255 = vpack.c.bf16 %v240, %v239
    %v256 = vpack.c.bf16 %v242, %v241
    %v257 = vpack.c.bf16 %v244, %v243
    %v258 = vpack.c.bf16 %v246, %v245
    %v259 = vpack.c.bf16 %v248, %v247
    %v260 = vpack.c.bf16 %v250, %v249
    %v261 = vpack.c.bf16 %v252, %v251
    %v262 = vpack.c.bf16 %v254, %v253
    %v263 = vld [vmem:[%s3] sm:$0xf]
    %v264 = vld [vmem:[%s3 + $0x4] sm:$0xf]
    %v265 = vld [vmem:[%s3 + $0x8] sm:$0xf]
    %v266 = vld [vmem:[%s3 + $0xc] sm:$0xf]
    %v267 = vld [vmem:[%s3 + $0x10] sm:$0xf]
    %v268 = vld [vmem:[%s3 + $0x14] sm:$0xf]
    %v269 = vld [vmem:[%s3 + $0x18] sm:$0xf]
    %v270 = vld [vmem:[%s3 + $0x1c] sm:$0xf]
    %v271 = vld [vmem:[%s3 + $0x20] sm:$0xf]
    %v272 = vld [vmem:[%s3 + $0x24] sm:$0xf]
    %v273 = vld [vmem:[%s3 + $0x28] sm:$0xf]
    %v274 = vld [vmem:[%s3 + $0x2c] sm:$0xf]
    %v275 = vld [vmem:[%s3 + $0x30] sm:$0xf]
    %v276 = vld [vmem:[%s3 + $0x34] sm:$0xf]
    %v277 = vld [vmem:[%s3 + $0x38] sm:$0xf]
    %v278 = vld [vmem:[%s3 + $0x3c] sm:$0xf]
    %v279 = vld [vmem:[%s4] sm:$0x1]
    %v281 = vlaneseq
    %v282 = vshrl.u32 %v281, 7
    %v283 = vsub.s32 0, %v282
    %v284 = vrot.slane %v279, %v283
    %v302 = vunpack.c.l.b16 %v263
    %v303 = vunpack.c.l.b16 %v264
    %v304 = vunpack.c.l.b16 %v265
    %v305 = vunpack.c.l.b16 %v266
    %v306 = vunpack.c.l.b16 %v267
    %v307 = vunpack.c.l.b16 %v268
    %v308 = vunpack.c.l.b16 %v269
    %v309 = vunpack.c.l.b16 %v270
    %v310 = vunpack.c.l.b16 %v271
    %v311 = vunpack.c.l.b16 %v272
    %v312 = vunpack.c.l.b16 %v273
    %v313 = vunpack.c.l.b16 %v274
    %v314 = vunpack.c.l.b16 %v275
    %v315 = vunpack.c.l.b16 %v276
    %v316 = vunpack.c.l.b16 %v277
    %v317 = vunpack.c.l.b16 %v278
    %v318 = vpack.c.b16 %v303, %v302
    %v319 = vpack.c.b16 %v305, %v304
    %v320 = vpack.c.b16 %v307, %v306
    %v321 = vpack.c.b16 %v309, %v308
    %v322 = vpack.c.b16 %v311, %v310
    %v323 = vpack.c.b16 %v313, %v312
    %v324 = vpack.c.b16 %v315, %v314
    %v325 = vpack.c.b16 %v317, %v316
    %334 = vmatprep.subr.bf16.mxu0 0
    %335 = vmatpush1.bf16.msra.mxu0 %v318
    %336 = vmatprep.subr.bf16.mxu0 0
    %337 = vmatpush1.bf16.msra.mxu0 %v319
    %338 = vmatprep.subr.bf16.mxu0 0
    %339 = vmatpush1.bf16.msra.mxu0 %v320
    %340 = vmatprep.subr.bf16.mxu0 0
    %341 = vmatpush1.bf16.msra.mxu0 %v321
    %342 = vmatprep.subr.bf16.mxu0 0
    %343 = vmatpush1.bf16.msra.mxu0 %v322
    %344 = vmatprep.subr.bf16.mxu0 0
    %345 = vmatpush1.bf16.msra.mxu0 %v323
    %346 = vmatprep.subr.bf16.mxu0 0
    %347 = vmatpush1.bf16.msra.mxu0 %v324
    %348 = vmatprep.subr.bf16.mxu0 0
    %349 = vmatpush1.bf16.msra.mxu0 %v325
    %350 = vmatprep.subr.bf16.mxu0 0
    %351 = vmatpush1.bf16.msra.mxu0 0
    %352 = vmatprep.subr.bf16.mxu0 0
    %353 = vmatpush1.bf16.msra.mxu0 0
    %354 = vmatprep.subr.bf16.mxu0 0
    %355 = vmatpush1.bf16.msra.mxu0 0
    %356 = vmatprep.subr.bf16.mxu0 0
    %357 = vmatpush1.bf16.msra.mxu0 0
    %358 = vmatprep.subr.bf16.mxu0 0
    %359 = vmatpush1.bf16.msra.mxu0 0
    %360 = vmatprep.subr.bf16.mxu0 0
    %361 = vmatpush1.bf16.msra.mxu0 0
    %362 = vmatprep.subr.bf16.mxu0 0
    %363 = vmatpush1.bf16.msra.mxu0 0
    %364 = vmatprep.subr.bf16.mxu0 0
    %365 = vmatpush1.bf16.msra.mxu0 0
    %366 = vmatprep.mubr.bf16.mxu0 0
    %367 = vmatmul.mubr.bf16.gmra.mrb[0].mxu0 %v255
    %v368 = vpop.f32.mrb[0].mxu0
    %v369 = vadd.f32 %v284, %v368
    %v370 = vpop.f32.mrb[0].mxu0
    %v371 = vpop.f32.mrb[0].mxu0
    %v372 = vadd.f32 %v284, %v371
    %v373 = vpop.f32.mrb[0].mxu0
    %374 = vmatprep.mubr.bf16.mxu0 0
    %375 = vmatmul.mubr.bf16.gmra.mrb[0].mxu0 %v256
    %v376 = vpop.f32.mrb[0].mxu0
    %v377 = vadd.f32 %v284, %v376
    %v378 = vpop.f32.mrb[0].mxu0
    %v379 = vpop.f32.mrb[0].mxu0
    %v380 = vadd.f32 %v284, %v379
    %v381 = vpop.f32.mrb[0].mxu0
    %382 = vmatprep.mubr.bf16.mxu0 0
    %383 = vmatmul.mubr.bf16.gmra.mrb[0].mxu0 %v257
    %v384 = vpop.f32.mrb[0].mxu0
    %v385 = vadd.f32 %v284, %v384
    %v386 = vpop.f32.mrb[0].mxu0
    %v387 = vpop.f32.mrb[0].mxu0
    %v388 = vadd.f32 %v284, %v387
    %v389 = vpop.f32.mrb[0].mxu0
    %390 = vmatprep.mubr.bf16.mxu0 0
    %391 = vmatmul.mubr.bf16.gmra.mrb[0].mxu0 %v258
    %v392 = vpop.f32.mrb[0].mxu0
    %v393 = vadd.f32 %v284, %v392
    %v394 = vpop.f32.mrb[0].mxu0
    %v395 = vpop.f32.mrb[0].mxu0
    %v396 = vadd.f32 %v284, %v395
    %v397 = vpop.f32.mrb[0].mxu0
    %398 = vmatprep.mubr.bf16.mxu0 0
    %399 = vmatmul.mubr.bf16.gmra.mrb[0].mxu0 %v259
    %v400 = vpop.f32.mrb[0].mxu0
    %v401 = vadd.f32 %v284, %v400
    %v402 = vpop.f32.mrb[0].mxu0
    %v403 = vpop.f32.mrb[0].mxu0
    %v404 = vadd.f32 %v284, %v403
    %v405 = vpop.f32.mrb[0].mxu0
    %406 = vmatprep.mubr.bf16.mxu0 0
    %407 = vmatmul.mubr.bf16.gmra.mrb[0].mxu0 %v260
    %v408 = vpop.f32.mrb[0].mxu0
    %v409 = vadd.f32 %v284, %v408
    %v410 = vpop.f32.mrb[0].mxu0
    %v411 = vpop.f32.mrb[0].mxu0
    %v412 = vadd.f32 %v284, %v411
    %v413 = vpop.f32.mrb[0].mxu0
    %414 = vmatprep.mubr.bf16.mxu0 0
    %415 = vmatmul.mubr.bf16.gmra.mrb[0].mxu0 %v261
    %v416 = vpop.f32.mrb[0].mxu0
    %v417 = vadd.f32 %v284, %v416
    %v418 = vpop.f32.mrb[0].mxu0
    %v419 = vpop.f32.mrb[0].mxu0
    %v420 = vadd.f32 %v284, %v419
    %v421 = vpop.f32.mrb[0].mxu0
    %422 = vmatprep.mubr.bf16.mxu0 0
    %423 = vmatmul.mubr.bf16.gmra.mrb[0].mxu0 %v262
    %v424 = vpop.f32.mrb[0].mxu0
    %v425 = vadd.f32 %v284, %v424
    %v426 = vpop.f32.mrb[0].mxu0
    %v427 = vpop.f32.mrb[0].mxu0
    %v428 = vadd.f32 %v284, %v427
    %v429 = vpop.f32.mrb[0].mxu0
    %430 = vdwg.mxu0
    %v431 = vmax.f32 %v369, 0.0
    %v432 = vmax.f32 %v372, 0.0
    %v433 = vmax.f32 %v377, 0.0
    %v434 = vmax.f32 %v380, 0.0
    %v435 = vmax.f32 %v385, 0.0
    %v436 = vmax.f32 %v388, 0.0
    %v437 = vmax.f32 %v393, 0.0
    %v438 = vmax.f32 %v396, 0.0
    %v439 = vmax.f32 %v401, 0.0
    %v440 = vmax.f32 %v404, 0.0
    %v441 = vmax.f32 %v409, 0.0
    %v442 = vmax.f32 %v412, 0.0
    %v443 = vmax.f32 %v417, 0.0
    %v444 = vmax.f32 %v420, 0.0
    %v445 = vmax.f32 %v425, 0.0
    %v446 = vmax.f32 %v428, 0.0
    %447 = vst [vmem:[#allocation2] sm:$0xff] %v431
    %448 = vst [vmem:[#allocation2 + $0x8] sm:$0xff] %v432
    %449 = vst [vmem:[#allocation2 + $0x10] sm:$0xff] %v433
    %450 = vst [vmem:[#allocation2 + $0x18] sm:$0xff] %v434
    %451 = vst [vmem:[#allocation2 + $0x20] sm:$0xff] %v435
    %452 = vst [vmem:[#allocation2 + $0x28] sm:$0xff] %v436
    %453 = vst [vmem:[#allocation2 + $0x30] sm:$0xff] %v437
    %454 = vst [vmem:[#allocation2 + $0x38] sm:$0xff] %v438
    %455 = vst [vmem:[#allocation2 + $0x40] sm:$0xff] %v439
    %456 = vst [vmem:[#allocation2 + $0x48] sm:$0xff] %v440
    %457 = vst [vmem:[#allocation2 + $0x50] sm:$0xff] %v441
    %458 = vst [vmem:[#allocation2 + $0x58] sm:$0xff] %v442
    %459 = vst [vmem:[#allocation2 + $0x60] sm:$0xff] %v443
    %460 = vst [vmem:[#allocation2 + $0x68] sm:$0xff] %v444
    %461 = vst [vmem:[#allocation2 + $0x70] sm:$0xff] %v445
    %462 = vst [vmem:[#allocation2 + $0x78] sm:$0xff] %v446
    // Predicated region
    $region22: #{tpu_custom_call.1} parent=1 // pred_check
      _
    $region23: #{tpu_custom_call.1} parent=1 // pred_check_branch
      %464 = sbr.rel (0) target = $region25
    $region24: #{tpu_custom_call.1} parent=1 // pred_region
      %s466 = ssub.s32 2048, 2048
      %467 = vsyncadd [#allocation3], %s466
      %s468 = sshll.u32 [#allocation2], 4
      %s469 = int_to_ptr.vmem [resolvable:$true] %s468
      %474 = dma.vmem_to_hbm [thread:$0]  %s469, 2048, %s5, [#allocation3], 128, 128, 8
    $region25: #{tpu_custom_call.1} parent=1 // pred_fallthru
      _
    // Predicated region
    $region26: #{tpu_custom_call.1} parent=1 // pred_check
      _
    $region27: #{tpu_custom_call.1} parent=1 // pred_check_branch
      %476 = sbr.rel (0) target = $region29
    $region28: #{tpu_custom_call.1} parent=1 // pred_region
      %477 = dma.done [#allocation3], 2048
    $region29: #{tpu_custom_call.1} parent=1 // pred_fallthru
      _
    %478 = vsyncpa [#allocation3], 1

// kernel: tpu_custom_call.1
$region0: #{tpu_custom_call.1}
  #allocation0 [shape = 'u32[]', space=smem, size = 0x4, offset = 0x4, fixed_abs, tag = 'smem constant byte address 0x4 - core index']
  #allocation1 [shape = 'u32[144,128]{1,0:T(1,128)}', space=vmem, size = 0x12000, scoped, tag = 'internal scratch']
  %s0 = inlined_call_operand.vmem [shape: bf16[128,64], index: 0, kind: input, shape index: {}]
  %s1 = inlined_call_operand.vmem [shape: bf16[64,128], index: 1, kind: input, shape index: {}]
  %s2 = inlined_call_operand.vmem [shape: f32[1,128], index: 2, kind: input, shape index: {}]
  %s3 = inlined_call_operand.vmem [shape: bf16[128,128], index: 3, kind: input, shape index: {}]
  %s4 = inlined_call_operand.vmem [shape: f32[1,128], index: 4, kind: input, shape index: {}]
  %s5 = inlined_call_operand.hbm [shape: f32[128,128], index: 5, kind: output, shape index: {}]
  %s6 = sld [smem:[#allocation0]]
  $region30: #{tpu_custom_call.1} parent=0
    _
  %s8 = ssub.s32 1, %s6
  %s9 = scalar_select 0, %s8, %s6
  $region1: #{tpu_custom_call.1} parent=0
    #allocation2 [shape = 'u8[65536]{0}', space=vmem, size = 0x10000, scoped, tag = 'output window, operand 0, single buffered']
    #allocation3 [shape = 's32[1]{0}', space=sflag, size = 0x4, scoped, tag = 'scoped memory for tpu_custom_call.1']
    %10 = vsyncpa [#allocation3], 0
    // Predicated region
    $region2: #{tpu_custom_call.1} parent=1 // pred_check
      _
    $region3: #{tpu_custom_call.1} parent=1 // pred_check_branch
      %12 = sbr.rel (0) target = $region5
    $region4: #{tpu_custom_call.1} parent=1 // pred_region
      _
    $region5: #{tpu_custom_call.1} parent=1 // pred_fallthru
      _
    // Predicated region
    $region6: #{tpu_custom_call.1} parent=1 // pred_check
      _
    $region7: #{tpu_custom_call.1} parent=1 // pred_check_branch
      %14 = sbr.rel (0) target = $region9
    $region8: #{tpu_custom_call.1} parent=1 // pred_region
      _
    $region9: #{tpu_custom_call.1} parent=1 // pred_fallthru
      _
    // Predicated region
    $region10: #{tpu_custom_call.1} parent=1 // pred_check
      _
    $region11: #{tpu_custom_call.1} parent=1 // pred_check_branch
      %16 = sbr.rel (0) target = $region13
    $region12: #{tpu_custom_call.1} parent=1 // pred_region
      _
    $region13: #{tpu_custom_call.1} parent=1 // pred_fallthru
      _
    // Predicated region
    $region14: #{tpu_custom_call.1} parent=1 // pred_check
      _
    $region15: #{tpu_custom_call.1} parent=1 // pred_check_branch
      %18 = sbr.rel (0) target = $region17
    $region16: #{tpu_custom_call.1} parent=1 // pred_region
      _
    $region17: #{tpu_custom_call.1} parent=1 // pred_fallthru
      _
    // Predicated region
    $region18: #{tpu_custom_call.1} parent=1 // pred_check
      _
    $region19: #{tpu_custom_call.1} parent=1 // pred_check_branch
      %20 = sbr.rel (0) target = $region21
    $region20: #{tpu_custom_call.1} parent=1 // pred_region
      _
    $region21: #{tpu_custom_call.1} parent=1 // pred_fallthru
      _
    %v22 = vld [vmem:[%s0] sm:$0xf]
    %v23 = vld [vmem:[%s0 + $0x4] sm:$0xf]
    %v24 = vld [vmem:[%s0 + $0x8] sm:$0xf]
    %v25 = vld [vmem:[%s0 + $0xc] sm:$0xf]
    %v26 = vld [vmem:[%s0 + $0x10] sm:$0xf]
    %v27 = vld [vmem:[%s0 + $0x14] sm:$0xf]
    %v28 = vld [vmem:[%s0 + $0x18] sm:$0xf]
    %v29 = vld [vmem:[%s0 + $0x1c] sm:$0xf]
    %v30 = vld [vmem:[%s0 + $0x20] sm:$0xf]
    %v31 = vld [vmem:[%s0 + $0x24] sm:$0xf]
    %v32 = vld [vmem:[%s0 + $0x28] sm:$0xf]
    %v33 = vld [vmem:[%s0 + $0x2c] sm:$0xf]
    %v34 = vld [vmem:[%s0 + $0x30] sm:$0xf]
    %v35 = vld [vmem:[%s0 + $0x34] sm:$0xf]
    %v36 = vld [vmem:[%s0 + $0x38] sm:$0xf]
    %v37 = vld [vmem:[%s0 + $0x3c] sm:$0xf]
    %v38 = vld [vmem:[%s1] sm:$0xf]
    %v39 = vld [vmem:[%s1 + $0x4] sm:$0xf]
    %v40 = vld [vmem:[%s1 + $0x8] sm:$0xf]
    %v41 = vld [vmem:[%s1 + $0xc] sm:$0xf]
    %v42 = vld [vmem:[%s1 + $0x10] sm:$0xf]
    %v43 = vld [vmem:[%s1 + $0x14] sm:$0xf]
    %v44 = vld [vmem:[%s1 + $0x18] sm:$0xf]
    %v45 = vld [vmem:[%s1 + $0x1c] sm:$0xf]
    %v46 = vld [vmem:[%s2] sm:$0x1]
    %v48 = vlaneseq
    %v49 = vshrl.u32 %v48, 7
    %v50 = vsub.s32 0, %v49
    %v51 = vrot.slane %v46, %v50
    %v69 = vunpack.c.l.b16 %v22
    %v70 = vunpack.c.l.b16 %v23
    %v71 = vunpack.c.l.b16 %v24
    %v72 = vunpack.c.l.b16 %v25
    %v73 = vunpack.c.l.b16 %v26
    %v74 = vunpack.c.l.b16 %v27
    %v75 = vunpack.c.l.b16 %v28
    %v76 = vunpack.c.l.b16 %v29
    %v77 = vunpack.c.l.b16 %v30
    %v78 = vunpack.c.l.b16 %v31
    %v79 = vunpack.c.l.b16 %v32
    %v80 = vunpack.c.l.b16 %v33
    %v81 = vunpack.c.l.b16 %v34
    %v82 = vunpack.c.l.b16 %v35
    %v83 = vunpack.c.l.b16 %v36
    %v84 = vunpack.c.l.b16 %v37
    %v85 = vpack.c.b16 %v70, %v69
    %v86 = vpack.c.b16 %v72, %v71
    %v87 = vpack.c.b16 %v74, %v73
    %v88 = vpack.c.b16 %v76, %v75
    %v89 = vpack.c.b16 %v78, %v77
    %v90 = vpack.c.b16 %v80, %v79
    %v91 = vpack.c.b16 %v82, %v81
    %v92 = vpack.c.b16 %v84, %v83
    %v101 = vunpack.c.l.b16 %v38
    %v102 = vunpack.c.l.b16 %v39
    %v103 = vunpack.c.l.b16 %v40
    %v104 = vunpack.c.l.b16 %v41
    %v105 = vunpack.c.l.b16 %v42
    %v106 = vunpack.c.l.b16 %v43
    %v107 = vunpack.c.l.b16 %v44
    %v108 = vunpack.c.l.b16 %v45
    %v109 = vpack.c.b16 %v102, %v101
    %v110 = vpack.c.b16 %v104, %v103
    %v111 = vpack.c.b16 %v106, %v105
    %v112 = vpack.c.b16 %v108, %v107
    %vm117 = vcmask 523264
    %v119 = vsel %vm117, %v85, 0
    %v122 = vsel %vm117, %v86, 0
    %v125 = vsel %vm117, %v87, 0
    %v128 = vsel %vm117, %v88, 0
    %v131 = vsel %vm117, %v89, 0
    %v134 = vsel %vm117, %v90, 0
    %v137 = vsel %vm117, %v91, 0
    %v140 = vsel %vm117, %v92, 0
    %142 = vmatprep.subr.bf16.mxu0 0
    %143 = vmatpush1.bf16.msra.mxu0 %v109
    %144 = vmatprep.subr.bf16.mxu0 0
    %145 = vmatpush1.bf16.msra.mxu0 %v110
    %146 = vmatprep.subr.bf16.mxu0 0
    %147 = vmatpush1.bf16.msra.mxu0 %v111
    %148 = vmatprep.subr.bf16.mxu0 0
    %149 = vmatpush1.bf16.msra.mxu0 %v112
    %150 = vmatprep.subr.bf16.mxu0 0
    %151 = vmatpush1.bf16.msra.mxu0 0
    %152 = vmatprep.subr.bf16.mxu0 0
    %153 = vmatpush1.bf16.msra.mxu0 0
    %154 = vmatprep.subr.bf16.mxu0 0
    %155 = vmatpush1.bf16.msra.mxu0 0
    %156 = vmatprep.subr.bf16.mxu0 0
    %157 = vmatpush1.bf16.msra.mxu0 0
    %158 = vmatprep.subr.bf16.mxu0 0
    %159 = vmatpush1.bf16.msra.mxu0 0
    %160 = vmatprep.subr.bf16.mxu0 0
    %161 = vmatpush1.bf16.msra.mxu0 0
    %162 = vmatprep.subr.bf16.mxu0 0
    %163 = vmatpush1.bf16.msra.mxu0 0
    %164 = vmatprep.subr.bf16.mxu0 0
    %165 = vmatpush1.bf16.msra.mxu0 0
    %166 = vmatprep.subr.bf16.mxu0 0
    %167 = vmatpush1.bf16.msra.mxu0 0
    %168 = vmatprep.subr.bf16.mxu0 0
    %169 = vmatpush1.bf16.msra.mxu0 0
    %170 = vmatprep.subr.bf16.mxu0 0
    %171 = vmatpush1.bf16.msra.mxu0 0
    %172 = vmatprep.subr.bf16.mxu0 0
    %173 = vmatpush1.bf16.msra.mxu0 0
    %174 = vmatprep.mubr.bf16.mxu0 0
    %175 = vmatmul.mubr.bf16.gmra.mrb[0].mxu0 %v119
    %v176 = vpop.f32.mrb[0].mxu0
    %v177 = vadd.f32 %v51, %v176
    %v178 = vpop.f32.mrb[0].mxu0
    %v179 = vpop.f32.mrb[0].mxu0
    %v180 = vadd.f32 %v51, %v179
    %v181 = vpop.f32.mrb[0].mxu0
    %182 = vmatprep.mubr.bf16.mxu0 0
    %183 = vmatmul.mubr.bf16.gmra.mrb[0].mxu0 %v122
    %v184 = vpop.f32.mrb[0].mxu0
    %v185 = vadd.f32 %v51, %v184
    %v186 = vpop.f32.mrb[0].mxu0
    %v187 = vpop.f32.mrb[0].mxu0
    %v188 = vadd.f32 %v51, %v187
    %v189 = vpop.f32.mrb[0].mxu0
    %190 = vmatprep.mubr.bf16.mxu0 0
    %191 = vmatmul.mubr.bf16.gmra.mrb[0].mxu0 %v125
    %v192 = vpop.f32.mrb[0].mxu0
    %v193 = vadd.f32 %v51, %v192
    %v194 = vpop.f32.mrb[0].mxu0
    %v195 = vpop.f32.mrb[0].mxu0
    %v196 = vadd.f32 %v51, %v195
    %v197 = vpop.f32.mrb[0].mxu0
    %198 = vmatprep.mubr.bf16.mxu0 0
    %199 = vmatmul.mubr.bf16.gmra.mrb[0].mxu0 %v128
    %v200 = vpop.f32.mrb[0].mxu0
    %v201 = vadd.f32 %v51, %v200
    %v202 = vpop.f32.mrb[0].mxu0
    %v203 = vpop.f32.mrb[0].mxu0
    %v204 = vadd.f32 %v51, %v203
    %v205 = vpop.f32.mrb[0].mxu0
    %206 = vmatprep.mubr.bf16.mxu0 0
    %207 = vmatmul.mubr.bf16.gmra.mrb[0].mxu0 %v131
    %v208 = vpop.f32.mrb[0].mxu0
    %v209 = vadd.f32 %v51, %v208
    %v210 = vpop.f32.mrb[0].mxu0
    %v211 = vpop.f32.mrb[0].mxu0
    %v212 = vadd.f32 %v51, %v211
    %v213 = vpop.f32.mrb[0].mxu0
    %214 = vmatprep.mubr.bf16.mxu0 0
    %215 = vmatmul.mubr.bf16.gmra.mrb[0].mxu0 %v134
    %v216 = vpop.f32.mrb[0].mxu0
    %v217 = vadd.f32 %v51, %v216
    %v218 = vpop.f32.mrb[0].mxu0
    %v219 = vpop.f32.mrb[0].mxu0
    %v220 = vadd.f32 %v51, %v219
    %v221 = vpop.f32.mrb[0].mxu0
    %222 = vmatprep.mubr.bf16.mxu0 0
    %223 = vmatmul.mubr.bf16.gmra.mrb[0].mxu0 %v137
    %v224 = vpop.f32.mrb[0].mxu0
    %v225 = vadd.f32 %v51, %v224
    %v226 = vpop.f32.mrb[0].mxu0
    %v227 = vpop.f32.mrb[0].mxu0
    %v228 = vadd.f32 %v51, %v227
    %v229 = vpop.f32.mrb[0].mxu0
    %230 = vmatprep.mubr.bf16.mxu0 0
    %231 = vmatmul.mubr.bf16.gmra.mrb[0].mxu0 %v140
    %v232 = vpop.f32.mrb[0].mxu0
    %v233 = vadd.f32 %v51, %v232
    %v234 = vpop.f32.mrb[0].mxu0
    %v235 = vpop.f32.mrb[0].mxu0
    %v236 = vadd.f32 %v51, %v235
    %v237 = vpop.f32.mrb[0].mxu0
    %238 = vdwg.mxu0
    %v239 = vmax.f32 %v177, 0.0
    %v240 = vmax.f32 %v180, 0.0
    %v241 = vmax.f32 %v185, 0.0
    %v242 = vmax.f32 %v188, 0.0
    %v243 = vmax.f32 %v193, 0.0
    %v244 = vmax.f32 %v196, 0.0
    %v245 = vmax.f32 %v201, 0.0
    %v246 = vmax.f32 %v204, 0.0
    %v247 = vmax.f32 %v209, 0.0
    %v248 = vmax.f32 %v212, 0.0
    %v249 = vmax.f32 %v217, 0.0
    %v250 = vmax.f32 %v220, 0.0
    %v251 = vmax.f32 %v225, 0.0
    %v252 = vmax.f32 %v228, 0.0
    %v253 = vmax.f32 %v233, 0.0
    %v254 = vmax.f32 %v236, 0.0
    %v255 = vpack.c.bf16 %v240, %v239
    %v256 = vpack.c.bf16 %v242, %v241
    %v257 = vpack.c.bf16 %v244, %v243
    %v258 = vpack.c.bf16 %v246, %v245
    %v259 = vpack.c.bf16 %v248, %v247
    %v260 = vpack.c.bf16 %v250, %v249
    %v261 = vpack.c.bf16 %v252, %v251
    %v262 = vpack.c.bf16 %v254, %v253
    %v263 = vld [vmem:[%s3] sm:$0xf]
    %v264 = vld [vmem:[%s3 + $0x4] sm:$0xf]
    %v265 = vld [vmem:[%s3 + $0x8] sm:$0xf]
    %v266 = vld [vmem:[%s3 + $0xc] sm:$0xf]
    %v267 = vld [vmem:[%s3 + $0x10] sm:$0xf]
    %v268 = vld [vmem:[%s3 + $0x14] sm:$0xf]
    %v269 = vld [vmem:[%s3 + $0x18] sm:$0xf]
    %v270 = vld [vmem:[%s3 + $0x1c] sm:$0xf]
    %v271 = vld [vmem:[%s3 + $0x20] sm:$0xf]
    %v272 = vld [vmem:[%s3 + $0x24] sm:$0xf]
    %v273 = vld [vmem:[%s3 + $0x28] sm:$0xf]
    %v274 = vld [vmem:[%s3 + $0x2c] sm:$0xf]
    %v275 = vld [vmem:[%s3 + $0x30] sm:$0xf]
    %v276 = vld [vmem:[%s3 + $0x34] sm:$0xf]
    %v277 = vld [vmem:[%s3 + $0x38] sm:$0xf]
    %v278 = vld [vmem:[%s3 + $0x3c] sm:$0xf]
    %v279 = vld [vmem:[%s4] sm:$0x1]
    %v281 = vlaneseq
    %v282 = vshrl.u32 %v281, 7
    %v283 = vsub.s32 0, %v282
    %v284 = vrot.slane %v279, %v283
    %v302 = vunpack.c.l.b16 %v263
    %v303 = vunpack.c.l.b16 %v264
    %v304 = vunpack.c.l.b16 %v265
    %v305 = vunpack.c.l.b16 %v266
    %v306 = vunpack.c.l.b16 %v267
    %v307 = vunpack.c.l.b16 %v268
    %v308 = vunpack.c.l.b16 %v269
    %v309 = vunpack.c.l.b16 %v270
    %v310 = vunpack.c.l.b16 %v271
    %v311 = vunpack.c.l.b16 %v272
    %v312 = vunpack.c.l.b16 %v273
    %v313 = vunpack.c.l.b16 %v274
    %v314 = vunpack.c.l.b16 %v275
    %v315 = vunpack.c.l.b16 %v276
    %v316 = vunpack.c.l.b16 %v277
    %v317 = vunpack.c.l.b16 %v278
    %v318 = vpack.c.b16 %v303, %v302
    %v319 = vpack.c.b16 %v305, %v304
    %v320 = vpack.c.b16 %v307, %v306
    %v321 = vpack.c.b16 %v309, %v308
    %v322 = vpack.c.b16 %v311, %v310
    %v323 = vpack.c.b16 %v313, %v312
    %v324 = vpack.c.b16 %v315, %v314
    %v325 = vpack.c.b16 %v317, %v316
    %334 = vmatprep.subr.bf16.mxu0 0
    %335 = vmatpush1.bf16.msra.mxu0 %v318
    %336 = vmatprep.subr.bf16.mxu0 0
    %337 = vmatpush1.bf16.msra.mxu0 %v319
    %338 = vmatprep.subr.bf16.mxu0 0
    %339 = vmatpush1.bf16.msra.mxu0 %v320
    %340 = vmatprep.subr.bf16.mxu0 0
    %341 = vmatpush1.bf16.msra.mxu0 %v321
    %342 = vmatprep.subr.bf16.mxu0 0
    %343 = vmatpush1.bf16.msra.mxu0 %v322
    %344 = vmatprep.subr.bf16.mxu0 0
    %345 = vmatpush1.bf16.msra.mxu0 %v323
    %346 = vmatprep.subr.bf16.mxu0 0
    %347 = vmatpush1.bf16.msra.mxu0 %v324
    %348 = vmatprep.subr.bf16.mxu0 0
    %349 = vmatpush1.bf16.msra.mxu0 %v325
    %350 = vmatprep.subr.bf16.mxu0 0
    %351 = vmatpush1.bf16.msra.mxu0 0
    %352 = vmatprep.subr.bf16.mxu0 0
    %353 = vmatpush1.bf16.msra.mxu0 0
    %354 = vmatprep.subr.bf16.mxu0 0
    %355 = vmatpush1.bf16.msra.mxu0 0
    %356 = vmatprep.subr.bf16.mxu0 0
    %357 = vmatpush1.bf16.msra.mxu0 0
    %358 = vmatprep.subr.bf16.mxu0 0
    %359 = vmatpush1.bf16.msra.mxu0 0
    %360 = vmatprep.subr.bf16.mxu0 0
    %361 = vmatpush1.bf16.msra.mxu0 0
    %362 = vmatprep.subr.bf16.mxu0 0
    %363 = vmatpush1.bf16.msra.mxu0 0
    %364 = vmatprep.subr.bf16.mxu0 0
    %365 = vmatpush1.bf16.msra.mxu0 0
    %366 = vmatprep.mubr.bf16.mxu0 0
    %367 = vmatmul.mubr.bf16.gmra.mrb[0].mxu0 %v255
    %v368 = vpop.f32.mrb[0].mxu0
    %v369 = vadd.f32 %v284, %v368
    %v370 = vpop.f32.mrb[0].mxu0
    %v371 = vpop.f32.mrb[0].mxu0
    %v372 = vadd.f32 %v284, %v371
    %v373 = vpop.f32.mrb[0].mxu0
    %374 = vmatprep.mubr.bf16.mxu0 0
    %375 = vmatmul.mubr.bf16.gmra.mrb[0].mxu0 %v256
    %v376 = vpop.f32.mrb[0].mxu0
    %v377 = vadd.f32 %v284, %v376
    %v378 = vpop.f32.mrb[0].mxu0
    %v379 = vpop.f32.mrb[0].mxu0
    %v380 = vadd.f32 %v284, %v379
    %v381 = vpop.f32.mrb[0].mxu0
    %382 = vmatprep.mubr.bf16.mxu0 0
    %383 = vmatmul.mubr.bf16.gmra.mrb[0].mxu0 %v257
    %v384 = vpop.f32.mrb[0].mxu0
    %v385 = vadd.f32 %v284, %v384
    %v386 = vpop.f32.mrb[0].mxu0
    %v387 = vpop.f32.mrb[0].mxu0
    %v388 = vadd.f32 %v284, %v387
    %v389 = vpop.f32.mrb[0].mxu0
    %390 = vmatprep.mubr.bf16.mxu0 0
    %391 = vmatmul.mubr.bf16.gmra.mrb[0].mxu0 %v258
    %v392 = vpop.f32.mrb[0].mxu0
    %v393 = vadd.f32 %v284, %v392
    %v394 = vpop.f32.mrb[0].mxu0
    %v395 = vpop.f32.mrb[0].mxu0
    %v396 = vadd.f32 %v284, %v395
    %v397 = vpop.f32.mrb[0].mxu0
    %398 = vmatprep.mubr.bf16.mxu0 0
    %399 = vmatmul.mubr.bf16.gmra.mrb[0].mxu0 %v259
    %v400 = vpop.f32.mrb[0].mxu0
    %v401 = vadd.f32 %v284, %v400
    %v402 = vpop.f32.mrb[0].mxu0
    %v403 = vpop.f32.mrb[0].mxu0
    %v404 = vadd.f32 %v284, %v403
    %v405 = vpop.f32.mrb[0].mxu0
    %406 = vmatprep.mubr.bf16.mxu0 0
    %407 = vmatmul.mubr.bf16.gmra.mrb[0].mxu0 %v260
    %v408 = vpop.f32.mrb[0].mxu0
    %v409 = vadd.f32 %v284, %v408
    %v410 = vpop.f32.mrb[0].mxu0
    %v411 = vpop.f32.mrb[0].mxu0
    %v412 = vadd.f32 %v284, %v411
    %v413 = vpop.f32.mrb[0].mxu0
    %414 = vmatprep.mubr.bf16.mxu0 0
    %415 = vmatmul.mubr.bf16.gmra.mrb[0].mxu0 %v261
    %v416 = vpop.f32.mrb[0].mxu0
    %v417 = vadd.f32 %v284, %v416
    %v418 = vpop.f32.mrb[0].mxu0
    %v419 = vpop.f32.mrb[0].mxu0
    %v420 = vadd.f32 %v284, %v419
    %v421 = vpop.f32.mrb[0].mxu0
    %422 = vmatprep.mubr.bf16.mxu0 0
    %423 = vmatmul.mubr.bf16.gmra.mrb[0].mxu0 %v262
    %v424 = vpop.f32.mrb[0].mxu0
    %v425 = vadd.f32 %v284, %v424
    %v426 = vpop.f32.mrb[0].mxu0
    %v427 = vpop.f32.mrb[0].mxu0
    %v428 = vadd.f32 %v284, %v427
    %v429 = vpop.f32.mrb[0].mxu0
    %430 = vdwg.mxu0
    %v431 = vmax.f32 %v369, 0.0
    %v432 = vmax.f32 %v372, 0.0
    %v433 = vmax.f32 %v377, 0.0
    %v434 = vmax.f32 %v380, 0.0
    %v435 = vmax.f32 %v385, 0.0
    %v436 = vmax.f32 %v388, 0.0
    %v437 = vmax.f32 %v393, 0.0
    %v438 = vmax.f32 %v396, 0.0
    %v439 = vmax.f32 %v401, 0.0
    %v440 = vmax.f32 %v404, 0.0
    %v441 = vmax.f32 %v409, 0.0
    %v442 = vmax.f32 %v412, 0.0
    %v443 = vmax.f32 %v417, 0.0
    %v444 = vmax.f32 %v420, 0.0
    %v445 = vmax.f32 %v425, 0.0
    %v446 = vmax.f32 %v428, 0.0
    %447 = vst [vmem:[#allocation2] sm:$0xff] %v431
    %448 = vst [vmem:[#allocation2 + $0x8] sm:$0xff] %v432
    %449 = vst [vmem:[#allocation2 + $0x10] sm:$0xff] %v433
    %450 = vst [vmem:[#allocation2 + $0x18] sm:$0xff] %v434
    %451 = vst [vmem:[#allocation2 + $0x20] sm:$0xff] %v435
    %452 = vst [vmem:[#allocation2 + $0x28] sm:$0xff] %v436
    %453 = vst [vmem:[#allocation2 + $0x30] sm:$0xff] %v437
    %454 = vst [vmem:[#allocation2 + $0x38] sm:$0xff] %v438
    %455 = vst [vmem:[#allocation2 + $0x40] sm:$0xff] %v439
    %456 = vst [vmem:[#allocation2 + $0x48] sm:$0xff] %v440
    %457 = vst [vmem:[#allocation2 + $0x50] sm:$0xff] %v441
    %458 = vst [vmem:[#allocation2 + $0x58] sm:$0xff] %v442
    %459 = vst [vmem:[#allocation2 + $0x60] sm:$0xff] %v443
    %460 = vst [vmem:[#allocation2 + $0x68] sm:$0xff] %v444
    %461 = vst [vmem:[#allocation2 + $0x70] sm:$0xff] %v445
    %462 = vst [vmem:[#allocation2 + $0x78] sm:$0xff] %v446
    // Predicated region
    $region22: #{tpu_custom_call.1} parent=1 // pred_check
      _
    $region23: #{tpu_custom_call.1} parent=1 // pred_check_branch
      %464 = sbr.rel (0) target = $region25
    $region24: #{tpu_custom_call.1} parent=1 // pred_region
      %s466 = ssub.s32 2048, 2048
      %467 = vsyncadd [#allocation3], %s466
      %s468 = sshll.u32 [#allocation2], 4
      %s469 = int_to_ptr.vmem [resolvable:$true] %s468
      %474 = dma.vmem_to_hbm [thread:$0]  %s469, 2048, %s5, [#allocation3], 128, 128, 8
    $region25: #{tpu_custom_call.1} parent=1 // pred_fallthru
      _
    // Predicated region
    $region26: #{tpu_custom_call.1} parent=1 // pred_check
      _
    $region27: #{tpu_custom_call.1} parent=1 // pred_check_branch
      %476 = sbr.rel (0) target = $region29
    $region28: #{tpu_custom_call.1} parent=1 // pred_region
      %477 = dma.done [#allocation3], 2048
    $region29: #{tpu_custom_call.1} parent=1 // pred_fallthru
      _
    %478 = vsyncpa [#allocation3], 1

</llo_original>
